<compile_context>
chip_gen: v6e
topology: v6e:2x2x1
jax: 0.10.0
libtpu: 0.0.40
codegen_flags: <defaults>
</compile_context>

<pallas_src>
import functools

import jax
import jax.numpy as jnp
from jax.experimental import pallas as pl
from jax.experimental.pallas import tpu as pltpu


KERNEL_SIZES = (3, 4, 5)
NUM_FILTERS = 100
CP = 128                               # filters padded to 128 lanes
KTOT = sum(KERNEL_SIZES)               # 12 (branch, tap) filter banks
FEAT_PAD = len(KERNEL_SIZES) * CP      # 384 padded FC input features
CLS_PAD = 128                          # padded logits lane width


# ----------------------------------------------------------------------------
# Fused kernel: conv-as-shifted-matmuls + bias + ReLU + max-over-time + FC
# ----------------------------------------------------------------------------
def _textcnn_kernel(emb_ref, wconv_ref, bconv_ref, wfc_ref, bfc_ref, out_ref):
    TB, L, E = emb_ref.shape
    emb2d = emb_ref[...].reshape(TB * L, E)                 # bf16

    # One tall matmul covering every (branch, tap) filter bank: MXU, f32 acc.
    p = jnp.dot(emb2d, wconv_ref[...],
                preferred_element_type=jnp.float32)         # (TB*L, KTOT*CP)
    p = p.reshape(TB, L, KTOT * CP)

    pooled = []
    col = 0
    for k in KERNEL_SIZES:
        Lout = L - k + 1
        # conv[t] = sum_j emb[t+j] @ W_j  ->  sum of time-shifted slices of p.
        s = p[:, 0:Lout, col:col + CP]
        for j in range(1, k):
            s = s + p[:, j:j + Lout, col + j * CP:col + (j + 1) * CP]
        pooled.append(jnp.max(s, axis=1))                   # (TB, CP)
        col += k * CP

    feats = jnp.concatenate(pooled, axis=1)                 # (TB, FEAT_PAD)
    # Bias + ReLU hoisted after the max (both monotone => identical result).
    feats = jnp.maximum(feats + bconv_ref[...], 0.0)

    # TODO(synk): dropout is treated as identity (eval / inference mode).
    out_ref[...] = (
        jnp.dot(feats.astype(jnp.bfloat16), wfc_ref[...],
                preferred_element_type=jnp.float32)
        + bfc_ref[...]
    )


def _pick_batch_tile(B, L):
    # Budget the dominant f32 intermediate (TB*L, KTOT*CP) at ~8 MiB so the
    # kernel (with double-buffered inputs) fits comfortably in v7x's 64 MiB
    # VMEM as well as v5e/v6e.
    tb_max = max(8, (8 * 1024 * 1024) // (L * KTOT * CP * 4))
    if B <= tb_max:
        return B
    for t in range(tb_max, 0, -1):
        if B % t == 0:
            return t
    return B


def _textcnn_fused(emb, wconv, bconv, wfc, bfc):
    B, L, E = emb.shape
    TB = _pick_batch_tile(B, L)
    nb = B // TB
    return pl.pallas_call(
        _textcnn_kernel,
        out_shape=jax.ShapeDtypeStruct((B, CLS_PAD), jnp.float32),
        grid=(nb,),
        in_specs=[
            pl.BlockSpec((TB, L, E), lambda i: (i, 0, 0)),          # emb tile
            pl.BlockSpec((E, KTOT * CP), lambda i: (0, 0)),         # conv weights
            pl.BlockSpec((1, FEAT_PAD), lambda i: (0, 0)),          # conv bias
            pl.BlockSpec((FEAT_PAD, CLS_PAD), lambda i: (0, 0)),    # fc weight
            pl.BlockSpec((1, CLS_PAD), lambda i: (0, 0)),           # fc bias
        ],
        out_specs=pl.BlockSpec((TB, CLS_PAD), lambda i: (i, 0)),
        compiler_params=pltpu.CompilerParams(
            dimension_semantics=("parallel",),
            vmem_limit_bytes=32 * 1024 * 1024,
        ),
    )(emb, wconv, bconv, wfc, bfc)


# ----------------------------------------------------------------------------
# Parameter construction (torch layout) and one-time packing to kernel layout
# ----------------------------------------------------------------------------
def init_params(key, vocab_size, embedding_dim, num_classes):
    keys = jax.random.split(key, 2 + 2 * len(KERNEL_SIZES) + 2)
    params = {}
    params["embedding"] = jax.random.normal(
        keys[0], (vocab_size, embedding_dim), jnp.float32) * 0.1
    convs = []
    for i, k in enumerate(KERNEL_SIZES):
        w = jax.random.normal(
            keys[1 + 2 * i], (NUM_FILTERS, 1, k, embedding_dim), jnp.float32) * 0.05
        b = jax.random.normal(keys[2 + 2 * i], (NUM_FILTERS,), jnp.float32) * 0.05
        convs.append((w, b))
    params["convs"] = convs
    params["fc_w"] = jax.random.normal(
        keys[-2], (NUM_FILTERS * len(KERNEL_SIZES), num_classes), jnp.float32) * 0.05
    params["fc_b"] = jax.random.normal(keys[-1], (num_classes,), jnp.float32) * 0.05
    return params


def pack_params(params):
    """One-time transform to kernel layout: padded, transposed, bf16 weights."""
    num_classes = params["fc_w"].shape[1]
    assert num_classes <= CLS_PAD

    wblocks, bblocks = [], []
    for (w, b), k in zip(params["convs"], KERNEL_SIZES):
        for j in range(k):
            wj = w[:, 0, j, :].T                                   # (E, 100)
            wblocks.append(jnp.pad(wj, ((0, 0), (0, CP - NUM_FILTERS))))
        bblocks.append(jnp.pad(b, (0, CP - NUM_FILTERS)))
    wconv = jnp.concatenate(wblocks, axis=1).astype(jnp.bfloat16)  # (E, KTOT*CP)
    bconv = jnp.concatenate(bblocks, axis=0).reshape(1, FEAT_PAD)  # f32

    wfc = jnp.zeros((FEAT_PAD, CLS_PAD), jnp.float32)
    for bi in range(len(KERNEL_SIZES)):
        wfc = wfc.at[bi * CP:bi * CP + NUM_FILTERS, :num_classes].set(
            params["fc_w"][bi * NUM_FILTERS:(bi + 1) * NUM_FILTERS, :])
    wfc = wfc.astype(jnp.bfloat16)
    bfc = jnp.zeros((1, CLS_PAD), jnp.float32).at[0, :num_classes].set(
        params["fc_b"])

    return {"embedding": params["embedding"], "wconv": wconv, "bconv": bconv,
            "wfc": wfc, "bfc": bfc}


@functools.partial(jax.jit, static_argnames=("num_classes",))
def textcnn_forward(packed, x, *, num_classes):
    """x: int32 token ids (B, L).  Returns logits (B, num_classes)."""
    emb = jnp.take(packed["embedding"], x, axis=0).astype(jnp.bfloat16)  # (B,L,E)
    logits_pad = _textcnn_fused(emb, packed["wconv"], packed["bconv"],
                                packed["wfc"], packed["bfc"])
    return logits_pad[:, :num_classes]


# ----------------------------------------------------------------------------
# Pure-JAX f32 reference (mirrors the PyTorch module) for a sanity check
# ----------------------------------------------------------------------------
def _reference_forward(params, x):
    emb = jnp.take(params["embedding"], x, axis=0)                  # (B, L, E)
    B, L, _ = emb.shape
    pooled = []
    for (w, b), k in zip(params["convs"], KERNEL_SIZES):
        Lout = L - k + 1
        s = jnp.zeros((B, Lout, NUM_FILTERS), jnp.float32)
        for j in range(k):
            s = s + jnp.einsum("ble,ce->blc", emb[:, j:j + Lout, :], w[:, 0, j, :])
        s = jax.nn.relu(s + b[None, None, :])
        pooled.append(jnp.max(s, axis=1))
    feats = jnp.concatenate(pooled, axis=1)
    return feats @ params["fc_w"] + params["fc_b"]


if __name__ == "__main__":
    key = jax.random.PRNGKey(0)
    k_param, k_tok = jax.random.split(key)

    vocab_size = 50
    embedding_dim = 32
    num_classes = 2
    batch = 2
    seq_len = 16   # must be >= max kernel size (5)

    raw = init_params(k_param, vocab_size, embedding_dim, num_classes)
    packed = pack_params(raw)
    tokens = jax.random.randint(k_tok, (batch, seq_len), 0, vocab_size, jnp.int32)

    logits = textcnn_forward(packed, tokens, num_classes=num_classes)
    jax.block_until_ready(logits)

    assert logits.shape == (batch, num_classes)
    assert logits.dtype == jnp.float32

    ref = _reference_forward(raw, tokens)
    max_err = float(jnp.max(jnp.abs(logits - ref)))
    assert max_err < 2e-2, f"mismatch vs reference: max abs err {max_err}"

    print("KERNEL_OK")
</pallas_src>

<mosaic_0001>
module attributes {stable_mosaic.version = 11 : i64} {
  func.func @_textcnn_kernel(%arg0: i32, %arg1: memref<2x16x32xbf16, #tpu.memory_space<vmem>>, %arg2: memref<32x1536xbf16, #tpu.memory_space<vmem>>, %arg3: memref<1x384xf32, #tpu.memory_space<vmem>>, %arg4: memref<384x128xbf16, #tpu.memory_space<vmem>>, %arg5: memref<1x128xf32, #tpu.memory_space<vmem>>, %arg6: memref<2x128xf32, #tpu.memory_space<vmem>>) attributes {dimension_semantics = [#tpu.dimension_semantics<parallel>], iteration_bounds = array<i64: 1>, scalar_prefetch = 0 : i64, scratch_operands = 0 : i64, tpu.core_type = #tpu.core_type<tc>, window_params = [{transform_indices = @transform_0, window_bounds = array<i64: 2, 16, 32>}, {pipeline_mode = #tpu.pipeline_mode<synchronous>, transform_indices = @transform_1, window_bounds = array<i64: 32, 1536>}, {pipeline_mode = #tpu.pipeline_mode<synchronous>, transform_indices = @transform_2, window_bounds = array<i64: 1, 384>}, {pipeline_mode = #tpu.pipeline_mode<synchronous>, transform_indices = @transform_3, window_bounds = array<i64: 384, 128>}, {pipeline_mode = #tpu.pipeline_mode<synchronous>, transform_indices = @transform_4, window_bounds = array<i64: 1, 128>}, {transform_indices = @transform_5, window_bounds = array<i64: 2, 128>}]} {
    %c0 = arith.constant 0 : index
    %c0_0 = arith.constant 0 : index
    %c0_1 = arith.constant 0 : index
    %0 = vector.load %arg1[%c0, %c0_0, %c0_1] : memref<2x16x32xbf16, #tpu.memory_space<vmem>>, vector<2x16x32xbf16>
    %1 = vector.shape_cast %0 : vector<2x16x32xbf16> to vector<32x32xbf16>
    %c0_2 = arith.constant 0 : index
    %c0_3 = arith.constant 0 : index
    %2 = vector.load %arg2[%c0_2, %c0_3] : memref<32x1536xbf16, #tpu.memory_space<vmem>>, vector<32x1536xbf16>
    %cst = arith.constant dense<0.000000e+00> : vector<32x1536xf32>
    %3 = tpu.matmul %1, %2, %cst {dimension_numbers = #tpu.dot_dimension_numbers<[1], [0], [0], [1], [0, 0, 1, 1], [], []>} : vector<32x32xbf16>, vector<32x1536xbf16>, vector<32x1536xf32> -> vector<32x1536xf32>
    %4 = vector.shape_cast %3 : vector<32x1536xf32> to vector<2x16x1536xf32>
    %5 = vector.extract_strided_slice %4 {offsets = [0, 0, 0], sizes = [2, 14, 128], strides = [1, 1, 1]} : vector<2x16x1536xf32> to vector<2x14x128xf32>
    %6 = vector.extract_strided_slice %4 {offsets = [0, 1, 128], sizes = [2, 14, 128], strides = [1, 1, 1]} : vector<2x16x1536xf32> to vector<2x14x128xf32>
    %7 = arith.addf %5, %6 : vector<2x14x128xf32>
    %8 = vector.extract_strided_slice %4 {offsets = [0, 2, 256], sizes = [2, 14, 128], strides = [1, 1, 1]} : vector<2x16x1536xf32> to vector<2x14x128xf32>
    %9 = arith.addf %7, %8 : vector<2x14x128xf32>
    %cst_4 = arith.constant dense<0xFF800000> : vector<2x128xf32>
    %10 = vector.multi_reduction <maximumf>, %9, %cst_4 [1] : vector<2x14x128xf32> to vector<2x128xf32>
    %11 = vector.extract_strided_slice %4 {offsets = [0, 0, 384], sizes = [2, 13, 128], strides = [1, 1, 1]} : vector<2x16x1536xf32> to vector<2x13x128xf32>
    %12 = vector.extract_strided_slice %4 {offsets = [0, 1, 512], sizes = [2, 13, 128], strides = [1, 1, 1]} : vector<2x16x1536xf32> to vector<2x13x128xf32>
    %13 = arith.addf %11, %12 : vector<2x13x128xf32>
    %14 = vector.extract_strided_slice %4 {offsets = [0, 2, 640], sizes = [2, 13, 128], strides = [1, 1, 1]} : vector<2x16x1536xf32> to vector<2x13x128xf32>
    %15 = arith.addf %13, %14 : vector<2x13x128xf32>
    %16 = vector.extract_strided_slice %4 {offsets = [0, 3, 768], sizes = [2, 13, 128], strides = [1, 1, 1]} : vector<2x16x1536xf32> to vector<2x13x128xf32>
    %17 = arith.addf %15, %16 : vector<2x13x128xf32>
    %cst_5 = arith.constant dense<0xFF800000> : vector<2x128xf32>
    %18 = vector.multi_reduction <maximumf>, %17, %cst_5 [1] : vector<2x13x128xf32> to vector<2x128xf32>
    %19 = vector.extract_strided_slice %4 {offsets = [0, 0, 896], sizes = [2, 12, 128], strides = [1, 1, 1]} : vector<2x16x1536xf32> to vector<2x12x128xf32>
    %20 = vector.extract_strided_slice %4 {offsets = [0, 1, 1024], sizes = [2, 12, 128], strides = [1, 1, 1]} : vector<2x16x1536xf32> to vector<2x12x128xf32>
    %21 = arith.addf %19, %20 : vector<2x12x128xf32>
    %22 = vector.extract_strided_slice %4 {offsets = [0, 2, 1152], sizes = [2, 12, 128], strides = [1, 1, 1]} : vector<2x16x1536xf32> to vector<2x12x128xf32>
    %23 = arith.addf %21, %22 : vector<2x12x128xf32>
    %24 = vector.extract_strided_slice %4 {offsets = [0, 3, 1280], sizes = [2, 12, 128], strides = [1, 1, 1]} : vector<2x16x1536xf32> to vector<2x12x128xf32>
    %25 = arith.addf %23, %24 : vector<2x12x128xf32>
    %26 = vector.extract_strided_slice %4 {offsets = [0, 4, 1408], sizes = [2, 12, 128], strides = [1, 1, 1]} : vector<2x16x1536xf32> to vector<2x12x128xf32>
    %27 = arith.addf %25, %26 : vector<2x12x128xf32>
    %cst_6 = arith.constant dense<0xFF800000> : vector<2x128xf32>
    %28 = vector.multi_reduction <maximumf>, %27, %cst_6 [1] : vector<2x12x128xf32> to vector<2x128xf32>
    %29 = tpu.concatenate %10, %18, %28 in 1 : vector<2x128xf32>, vector<2x128xf32>, vector<2x128xf32> -> vector<2x384xf32>
    %c0_7 = arith.constant 0 : index
    %c0_8 = arith.constant 0 : index
    %30 = vector.load %arg3[%c0_7, %c0_8] : memref<1x384xf32, #tpu.memory_space<vmem>>, vector<1x384xf32>
    %31 = vector.broadcast %30 : vector<1x384xf32> to vector<2x384xf32>
    %32 = arith.addf %29, %31 : vector<2x384xf32>
    %cst_9 = arith.constant 0.000000e+00 : f32
    %33 = vector.broadcast %cst_9 : f32 to vector<2x384xf32>
    %34 = arith.maximumf %32, %33 : vector<2x384xf32>
    %35 = arith.truncf %34 : vector<2x384xf32> to vector<2x384xbf16>
    %c0_10 = arith.constant 0 : index
    %c0_11 = arith.constant 0 : index
    %36 = vector.load %arg4[%c0_10, %c0_11] : memref<384x128xbf16, #tpu.memory_space<vmem>>, vector<384x128xbf16>
    %cst_12 = arith.constant dense<0.000000e+00> : vector<2x128xf32>
    %37 = tpu.matmul %35, %36, %cst_12 {dimension_numbers = #tpu.dot_dimension_numbers<[1], [0], [0], [1], [0, 0, 1, 1], [], []>} : vector<2x384xbf16>, vector<384x128xbf16>, vector<2x128xf32> -> vector<2x128xf32>
    %c0_13 = arith.constant 0 : index
    %c0_14 = arith.constant 0 : index
    %38 = vector.load %arg5[%c0_13, %c0_14] : memref<1x128xf32, #tpu.memory_space<vmem>>, vector<1x128xf32>
    %39 = vector.broadcast %38 : vector<1x128xf32> to vector<2x128xf32>
    %40 = arith.addf %37, %39 : vector<2x128xf32>
    %c0_15 = arith.constant 0 : index
    %c0_16 = arith.constant 0 : index
    %41 = vector.load %arg6[%c0_15, %c0_16] : memref<2x128xf32, #tpu.memory_space<vmem>>, vector<2x128xf32>
    tpu.vector_store %arg6[%c0_15, %c0_16], %40 {strides = array<i32>} : memref<2x128xf32, #tpu.memory_space<vmem>>, vector<2x128xf32>,
    return
  }
  func.func @transform_0(%arg0: i32) -> (i32, i32, i32) {
    %c0_i32 = arith.constant 0 : i32
    %c0_i32_0 = arith.constant 0 : i32
    %c0_i32_1 = arith.constant 0 : i32
    return %arg0, %c0_i32, %c0_i32_0 : i32, i32, i32
  }
  func.func @transform_1(%arg0: i32) -> (i32, i32) {
    %c0_i32 = arith.constant 0 : i32
    %c0_i32_0 = arith.constant 0 : i32
    %c0_i32_1 = arith.constant 0 : i32
    return %c0_i32, %c0_i32_0 : i32, i32
  }
  func.func @transform_2(%arg0: i32) -> (i32, i32) {
    %c0_i32 = arith.constant 0 : i32
    %c0_i32_0 = arith.constant 0 : i32
    %c0_i32_1 = arith.constant 0 : i32
    return %c0_i32, %c0_i32_0 : i32, i32
  }
  func.func @transform_3(%arg0: i32) -> (i32, i32) {
    %c0_i32 = arith.constant 0 : i32
    %c0_i32_0 = arith.constant 0 : i32
    %c0_i32_1 = arith.constant 0 : i32
    return %c0_i32, %c0_i32_0 : i32, i32
  }
  func.func @transform_4(%arg0: i32) -> (i32, i32) {
    %c0_i32 = arith.constant 0 : i32
    %c0_i32_0 = arith.constant 0 : i32
    %c0_i32_1 = arith.constant 0 : i32
    return %c0_i32, %c0_i32_0 : i32, i32
  }
  func.func @transform_5(%arg0: i32) -> (i32, i32) {
    %c0_i32 = arith.constant 0 : i32
    %c0_i32_0 = arith.constant 0 : i32
    return %arg0, %c0_i32 : i32, i32
  }
}

</mosaic_0001>

<llo_original>
// kernel: textcnn_forward.1
$region0: #{textcnn_forward.1}
  #allocation0 [shape = 'u32[]', space=smem, size = 0x4, offset = 0x4, fixed_abs, tag = 'smem constant byte address 0x4 - core index']
  #allocation1 [shape = 'u32[144,128]{1,0:T(1,128)}', space=vmem, size = 0x12000, scoped, tag = 'internal scratch']
  %s0 = inlined_call_operand.vmem [shape: bf16[2,16,32], index: 0, kind: input, shape index: {}]
  %s1 = inlined_call_operand.vmem [shape: bf16[32,1536], index: 1, kind: input, shape index: {}]
  %s2 = inlined_call_operand.vmem [shape: f32[1,384], index: 2, kind: input, shape index: {}]
  %s3 = inlined_call_operand.hbm [shape: bf16[384,128], index: 3, kind: input, shape index: {}]
  %s4 = inlined_call_operand.vmem [shape: f32[1,128], index: 4, kind: input, shape index: {}]
  %s5 = inlined_call_operand.hbm [shape: f32[2,128], index: 5, kind: output, shape index: {}]
  %s6 = sld [smem:[#allocation0]]
  $region34: #{textcnn_forward.1} parent=0
    _
  %s8 = ssub.s32 1, %s6
  %s9 = scalar_select 0, %s8, %s6
  $region1: #{textcnn_forward.1} parent=0
    #allocation2 [shape = 'u8[98304]{0}', space=vmem, size = 0x18000, scoped, tag = 'input window, operand 3, single buffered']
    #allocation3 [shape = 's32[1]{0}', space=sflag, size = 0x4, scoped, tag = 'scoped memory for textcnn_forward.1']
    #allocation4 [shape = 's32[1]{0}', space=sflag, size = 0x4, scoped, tag = 'scoped memory for textcnn_forward.1']
    #allocation5 [shape = 'u8[1024]{0}', space=vmem, size = 0x400, scoped, tag = 'output window, operand 0, single buffered']
    %10 = vsyncpa [#allocation3], 0
    %11 = vsyncpa [#allocation4], 0
    // Predicated region
    $region2: #{textcnn_forward.1} parent=1 // pred_check
      _
    $region3: #{textcnn_forward.1} parent=1 // pred_check_branch
      %13 = sbr.rel (0) target = $region5
    $region4: #{textcnn_forward.1} parent=1 // pred_region
      _
    $region5: #{textcnn_forward.1} parent=1 // pred_fallthru
      _
    // Predicated region
    $region6: #{textcnn_forward.1} parent=1 // pred_check
      _
    $region7: #{textcnn_forward.1} parent=1 // pred_check_branch
      %15 = sbr.rel (0) target = $region9
    $region8: #{textcnn_forward.1} parent=1 // pred_region
      _
    $region9: #{textcnn_forward.1} parent=1 // pred_fallthru
      _
    // Predicated region
    $region10: #{textcnn_forward.1} parent=1 // pred_check
      _
    $region11: #{textcnn_forward.1} parent=1 // pred_check_branch
      %17 = sbr.rel (0) target = $region13
    $region12: #{textcnn_forward.1} parent=1 // pred_region
      _
    $region13: #{textcnn_forward.1} parent=1 // pred_fallthru
      _
    // Predicated region
    $region14: #{textcnn_forward.1} parent=1 // pred_check
      _
    $region15: #{textcnn_forward.1} parent=1 // pred_check_branch
      %19 = sbr.rel (0) target = $region17
    $region16: #{textcnn_forward.1} parent=1 // pred_region
      %s21 = ssub.s32 3072, 3072
      %22 = vsyncadd [#allocation3], %s21
      %s23 = sshll.u32 [#allocation2], 4
      %s24 = int_to_ptr.vmem [resolvable:$true] %s23
      %29 = dma.hbm_to_vmem [thread:$0]  %s3, 3072, %s24, [#allocation3], 64, 64, 4
    $region17: #{textcnn_forward.1} parent=1 // pred_fallthru
      _
    // Predicated region
    $region18: #{textcnn_forward.1} parent=1 // pred_check
      _
    $region19: #{textcnn_forward.1} parent=1 // pred_check_branch
      %31 = sbr.rel (0) target = $region21
    $region20: #{textcnn_forward.1} parent=1 // pred_region
      _
    $region21: #{textcnn_forward.1} parent=1 // pred_fallthru
      _
    // Predicated region
    $region22: #{textcnn_forward.1} parent=1 // pred_check
      _
    $region23: #{textcnn_forward.1} parent=1 // pred_check_branch
      %33 = sbr.rel (0) target = $region25
    $region24: #{textcnn_forward.1} parent=1 // pred_region
      %34 = dma.done [#allocation3], 3072
    $region25: #{textcnn_forward.1} parent=1 // pred_fallthru
      _
    %v36 = vld [vmem:[%s0] sm:$0xf]
    %v37 = vld [vmem:[%s0 + $0x4] sm:$0xf]
    %v38 = vld [vmem:[%s0 + $0x8] sm:$0xf]
    %v39 = vld [vmem:[%s0 + $0xc] sm:$0xf]
    %v40 = vld [vmem:[%s1] sm:$0xff]
    %v41 = vld [vmem:[%s1 + $0x8] sm:$0xff]
    %v42 = vld [vmem:[%s1 + $0x10] sm:$0xff]
    %v43 = vld [vmem:[%s1 + $0x18] sm:$0xff]
    %v44 = vld [vmem:[%s1 + $0x20] sm:$0xff]
    %v45 = vld [vmem:[%s1 + $0x28] sm:$0xff]
    %v46 = vld [vmem:[%s1 + $0x30] sm:$0xff]
    %v47 = vld [vmem:[%s1 + $0x38] sm:$0xff]
    %v48 = vld [vmem:[%s1 + $0x40] sm:$0xff]
    %v49 = vld [vmem:[%s1 + $0x48] sm:$0xff]
    %v50 = vld [vmem:[%s1 + $0x50] sm:$0xff]
    %v51 = vld [vmem:[%s1 + $0x58] sm:$0xff]
    %v52 = vld [vmem:[%s1 + $0x60] sm:$0xff]
    %v53 = vld [vmem:[%s1 + $0x68] sm:$0xff]
    %v54 = vld [vmem:[%s1 + $0x70] sm:$0xff]
    %v55 = vld [vmem:[%s1 + $0x78] sm:$0xff]
    %v56 = vld [vmem:[%s1 + $0x80] sm:$0xff]
    %v57 = vld [vmem:[%s1 + $0x88] sm:$0xff]
    %v58 = vld [vmem:[%s1 + $0x90] sm:$0xff]
    %v59 = vld [vmem:[%s1 + $0x98] sm:$0xff]
    %v60 = vld [vmem:[%s1 + $0xa0] sm:$0xff]
    %v61 = vld [vmem:[%s1 + $0xa8] sm:$0xff]
    %v62 = vld [vmem:[%s1 + $0xb0] sm:$0xff]
    %v63 = vld [vmem:[%s1 + $0xb8] sm:$0xff]
    %v68 = vunpack.c.l.b16 %v36
    %v69 = vunpack.c.l.b16 %v37
    %v70 = vunpack.c.l.b16 %v38
    %v71 = vunpack.c.l.b16 %v39
    %v72 = vpack.c.b16 %v69, %v68
    %v73 = vpack.c.b16 %v71, %v70
    %v98 = vunpack.c.l.b16 %v40
    %v99 = vunpack.c.h.b16 %v40
    %v100 = vunpack.c.l.b16 %v41
    %v101 = vunpack.c.h.b16 %v41
    %v102 = vunpack.c.l.b16 %v42
    %v103 = vunpack.c.h.b16 %v42
    %v104 = vunpack.c.l.b16 %v43
    %v105 = vunpack.c.h.b16 %v43
    %v106 = vunpack.c.l.b16 %v44
    %v107 = vunpack.c.h.b16 %v44
    %v108 = vunpack.c.l.b16 %v45
    %v109 = vunpack.c.h.b16 %v45
    %v110 = vunpack.c.l.b16 %v46
    %v111 = vunpack.c.h.b16 %v46
    %v112 = vunpack.c.l.b16 %v47
    %v113 = vunpack.c.h.b16 %v47
    %v114 = vunpack.c.l.b16 %v48
    %v115 = vunpack.c.h.b16 %v48
    %v116 = vunpack.c.l.b16 %v49
    %v117 = vunpack.c.h.b16 %v49
    %v118 = vunpack.c.l.b16 %v50
    %v119 = vunpack.c.h.b16 %v50
    %v120 = vunpack.c.l.b16 %v51
    %v121 = vunpack.c.h.b16 %v51
    %v122 = vunpack.c.l.b16 %v52
    %v123 = vunpack.c.h.b16 %v52
    %v124 = vunpack.c.l.b16 %v53
    %v125 = vunpack.c.h.b16 %v53
    %v126 = vunpack.c.l.b16 %v54
    %v127 = vunpack.c.h.b16 %v54
    %v128 = vunpack.c.l.b16 %v55
    %v129 = vunpack.c.h.b16 %v55
    %v130 = vunpack.c.l.b16 %v56
    %v131 = vunpack.c.h.b16 %v56
    %v132 = vunpack.c.l.b16 %v57
    %v133 = vunpack.c.h.b16 %v57
    %v134 = vunpack.c.l.b16 %v58
    %v135 = vunpack.c.h.b16 %v58
    %v136 = vunpack.c.l.b16 %v59
    %v137 = vunpack.c.h.b16 %v59
    %v138 = vunpack.c.l.b16 %v60
    %v139 = vunpack.c.h.b16 %v60
    %v140 = vunpack.c.l.b16 %v61
    %v141 = vunpack.c.h.b16 %v61
    %v142 = vunpack.c.l.b16 %v62
    %v143 = vunpack.c.h.b16 %v62
    %v144 = vunpack.c.l.b16 %v63
    %v145 = vunpack.c.h.b16 %v63
    %v146 = vpack.c.b16 %v110, %v98
    %v147 = vpack.c.b16 %v111, %v99
    %v148 = vpack.c.b16 %v112, %v100
    %v149 = vpack.c.b16 %v113, %v101
    %v150 = vpack.c.b16 %v114, %v102
    %v151 = vpack.c.b16 %v115, %v103
    %v152 = vpack.c.b16 %v116, %v104
    %v153 = vpack.c.b16 %v117, %v105
    %v154 = vpack.c.b16 %v118, %v106
    %v155 = vpack.c.b16 %v119, %v107
    %v156 = vpack.c.b16 %v120, %v108
    %v157 = vpack.c.b16 %v121, %v109
    %v158 = vpack.c.b16 %v134, %v122
    %v159 = vpack.c.b16 %v135, %v123
    %v160 = vpack.c.b16 %v136, %v124
    %v161 = vpack.c.b16 %v137, %v125
    %v162 = vpack.c.b16 %v138, %v126
    %v163 = vpack.c.b16 %v139, %v127
    %v164 = vpack.c.b16 %v140, %v128
    %v165 = vpack.c.b16 %v141, %v129
    %v166 = vpack.c.b16 %v142, %v130
    %v167 = vpack.c.b16 %v143, %v131
    %v168 = vpack.c.b16 %v144, %v132
    %v169 = vpack.c.b16 %v145, %v133
    %vm194 = vcmask 261120
    %v196 = vsel %vm194, %v72, 0
    %v199 = vsel %vm194, %v73, 0
    %201 = vmatprep.subr.bf16.mxu0 0
    %202 = vmatpush1.bf16.msra.mxu0 0
    %203 = vmatprep.subr.bf16.mxu0 0
    %204 = vmatpush1.bf16.msra.mxu0 0
    %205 = vmatprep.subr.bf16.mxu0 0
    %206 = vmatpush1.bf16.msra.mxu0 0
    %207 = vmatprep.subr.bf16.mxu0 0
    %208 = vmatpush1.bf16.msra.mxu0 0
    %209 = vmatprep.subr.bf16.mxu0 0
    %210 = vmatpush1.bf16.msra.mxu0 0
    %211 = vmatprep.subr.bf16.mxu0 0
    %212 = vmatpush1.bf16.msra.mxu0 0
    %213 = vmatprep.subr.bf16.mxu0 %v159
    %214 = vmatpush1.bf16.msra.mxu0 %v158
    %215 = vmatprep.subr.bf16.mxu0 %v147
    %216 = vmatpush1.bf16.msra.mxu0 %v146
    %217 = vmatprep.subr.bf16.mxu0 0
    %218 = vmatpush2.bf16.msra.mxu0 0
    %219 = vmatprep.subr.bf16.mxu0 0
    %220 = vmatpush2.bf16.msra.mxu0 0
    %221 = vmatprep.subr.bf16.mxu0 0
    %222 = vmatpush2.bf16.msra.mxu0 0
    %223 = vmatprep.subr.bf16.mxu0 0
    %224 = vmatpush2.bf16.msra.mxu0 0
    %225 = vmatprep.subr.bf16.mxu0 0
    %226 = vmatpush2.bf16.msra.mxu0 0
    %227 = vmatprep.subr.bf16.mxu0 0
    %228 = vmatpush2.bf16.msra.mxu0 0
    %229 = vmatprep.subr.bf16.mxu0 0
    %230 = vmatpush2.bf16.msra.mxu0 0
    %231 = vmatprep.subr.bf16.mxu0 0
    %232 = vmatpush2.bf16.msra.mxu0 0
    %233 = vmatprep.mubr.bf16.mxu0 0
    %234 = vmatmul.mubr.bf16.gmra.mxu0 %v196
    %v235 = vpop.f32.mrf.mxu0
    %v236 = vadd.f32 0.0, %v235
    %v237 = vpop.f32.mrf.mxu0
    %v238 = vadd.f32 0.0, %v237
    %v239 = vpop.f32.mrf.mxu0
    %v240 = vadd.f32 0.0, %v239
    %v241 = vpop.f32.mrf.mxu0
    %v242 = vadd.f32 0.0, %v241
    %243 = vmatprep.mubr.bf16.mxu0 0
    %244 = vmatmul.mubr.bf16.gmra.mxu0 %v199
    %v245 = vpop.f32.mrf.mxu0
    %v246 = vadd.f32 0.0, %v245
    %v247 = vpop.f32.mrf.mxu0
    %v248 = vadd.f32 0.0, %v247
    %v249 = vpop.f32.mrf.mxu0
    %v250 = vadd.f32 0.0, %v249
    %v251 = vpop.f32.mrf.mxu0
    %v252 = vadd.f32 0.0, %v251
    %253 = vdwg.mxu0
    %254 = vmatprep.subr.bf16.mxu0 0
    %255 = vmatpush1.bf16.msra.mxu0 0
    %256 = vmatprep.subr.bf16.mxu0 0
    %257 = vmatpush1.bf16.msra.mxu0 0
    %258 = vmatprep.subr.bf16.mxu0 0
    %259 = vmatpush1.bf16.msra.mxu0 0
    %260 = vmatprep.subr.bf16.mxu0 0
    %261 = vmatpush1.bf16.msra.mxu0 0
    %262 = vmatprep.subr.bf16.mxu0 0
    %263 = vmatpush1.bf16.msra.mxu0 0
    %264 = vmatprep.subr.bf16.mxu0 0
    %265 = vmatpush1.bf16.msra.mxu0 0
    %266 = vmatprep.subr.bf16.mxu0 %v161
    %267 = vmatpush1.bf16.msra.mxu0 %v160
    %268 = vmatprep.subr.bf16.mxu0 %v149
    %269 = vmatpush1.bf16.msra.mxu0 %v148
    %270 = vmatprep.subr.bf16.mxu0 0
    %271 = vmatpush2.bf16.msra.mxu0 0
    %272 = vmatprep.subr.bf16.mxu0 0
    %273 = vmatpush2.bf16.msra.mxu0 0
    %274 = vmatprep.subr.bf16.mxu0 0
    %275 = vmatpush2.bf16.msra.mxu0 0
    %276 = vmatprep.subr.bf16.mxu0 0
    %277 = vmatpush2.bf16.msra.mxu0 0
    %278 = vmatprep.subr.bf16.mxu0 0
    %279 = vmatpush2.bf16.msra.mxu0 0
    %280 = vmatprep.subr.bf16.mxu0 0
    %281 = vmatpush2.bf16.msra.mxu0 0
    %282 = vmatprep.subr.bf16.mxu0 0
    %283 = vmatpush2.bf16.msra.mxu0 0
    %284 = vmatprep.subr.bf16.mxu0 0
    %285 = vmatpush2.bf16.msra.mxu0 0
    %286 = vmatprep.mubr.bf16.mxu0 0
    %287 = vmatmul.mubr.bf16.gmra.mxu0 %v196
    %v288 = vpop.f32.mrf.mxu0
    %v289 = vadd.f32 0.0, %v288
    %v290 = vpop.f32.mrf.mxu0
    %v291 = vadd.f32 0.0, %v290
    %v292 = vpop.f32.mrf.mxu0
    %v293 = vadd.f32 0.0, %v292
    %v294 = vpop.f32.mrf.mxu0
    %v295 = vadd.f32 0.0, %v294
    %296 = vmatprep.mubr.bf16.mxu0 0
    %297 = vmatmul.mubr.bf16.gmra.mxu0 %v199
    %v298 = vpop.f32.mrf.mxu0
    %v299 = vadd.f32 0.0, %v298
    %v300 = vpop.f32.mrf.mxu0
    %v301 = vadd.f32 0.0, %v300
    %v302 = vpop.f32.mrf.mxu0
    %v303 = vadd.f32 0.0, %v302
    %v304 = vpop.f32.mrf.mxu0
    %v305 = vadd.f32 0.0, %v304
    %306 = vdwg.mxu0
    %307 = vmatprep.subr.bf16.mxu0 0
    %308 = vmatpush1.bf16.msra.mxu0 0
    %309 = vmatprep.subr.bf16.mxu0 0
    %310 = vmatpush1.bf16.msra.mxu0 0
    %311 = vmatprep.subr.bf16.mxu0 0
    %312 = vmatpush1.bf16.msra.mxu0 0
    %313 = vmatprep.subr.bf16.mxu0 0
    %314 = vmatpush1.bf16.msra.mxu0 0
    %315 = vmatprep.subr.bf16.mxu0 0
    %316 = vmatpush1.bf16.msra.mxu0 0
    %317 = vmatprep.subr.bf16.mxu0 0
    %318 = vmatpush1.bf16.msra.mxu0 0
    %319 = vmatprep.subr.bf16.mxu0 %v163
    %320 = vmatpush1.bf16.msra.mxu0 %v162
    %321 = vmatprep.subr.bf16.mxu0 %v151
    %322 = vmatpush1.bf16.msra.mxu0 %v150
    %323 = vmatprep.subr.bf16.mxu0 0
    %324 = vmatpush2.bf16.msra.mxu0 0
    %325 = vmatprep.subr.bf16.mxu0 0
    %326 = vmatpush2.bf16.msra.mxu0 0
    %327 = vmatprep.subr.bf16.mxu0 0
    %328 = vmatpush2.bf16.msra.mxu0 0
    %329 = vmatprep.subr.bf16.mxu0 0
    %330 = vmatpush2.bf16.msra.mxu0 0
    %331 = vmatprep.subr.bf16.mxu0 0
    %332 = vmatpush2.bf16.msra.mxu0 0
    %333 = vmatprep.subr.bf16.mxu0 0
    %334 = vmatpush2.bf16.msra.mxu0 0
    %335 = vmatprep.subr.bf16.mxu0 0
    %336 = vmatpush2.bf16.msra.mxu0 0
    %337 = vmatprep.subr.bf16.mxu0 0
    %338 = vmatpush2.bf16.msra.mxu0 0
    %339 = vmatprep.mubr.bf16.mxu0 0
    %340 = vmatmul.mubr.bf16.gmra.mxu0 %v196
    %v341 = vpop.f32.mrf.mxu0
    %v342 = vadd.f32 0.0, %v341
    %v343 = vpop.f32.mrf.mxu0
    %v344 = vadd.f32 0.0, %v343
    %v345 = vpop.f32.mrf.mxu0
    %v346 = vadd.f32 0.0, %v345
    %v347 = vpop.f32.mrf.mxu0
    %v348 = vadd.f32 0.0, %v347
    %349 = vmatprep.mubr.bf16.mxu0 0
    %350 = vmatmul.mubr.bf16.gmra.mxu0 %v199
    %v351 = vpop.f32.mrf.mxu0
    %v352 = vadd.f32 0.0, %v351
    %v353 = vpop.f32.mrf.mxu0
    %v354 = vadd.f32 0.0, %v353
    %v355 = vpop.f32.mrf.mxu0
    %v356 = vadd.f32 0.0, %v355
    %v357 = vpop.f32.mrf.mxu0
    %v358 = vadd.f32 0.0, %v357
    %359 = vdwg.mxu0
    %360 = vmatprep.subr.bf16.mxu0 0
    %361 = vmatpush1.bf16.msra.mxu0 0
    %362 = vmatprep.subr.bf16.mxu0 0
    %363 = vmatpush1.bf16.msra.mxu0 0
    %364 = vmatprep.subr.bf16.mxu0 0
    %365 = vmatpush1.bf16.msra.mxu0 0
    %366 = vmatprep.subr.bf16.mxu0 0
    %367 = vmatpush1.bf16.msra.mxu0 0
    %368 = vmatprep.subr.bf16.mxu0 0
    %369 = vmatpush1.bf16.msra.mxu0 0
    %370 = vmatprep.subr.bf16.mxu0 0
    %371 = vmatpush1.bf16.msra.mxu0 0
    %372 = vmatprep.subr.bf16.mxu0 %v165
    %373 = vmatpush1.bf16.msra.mxu0 %v164
    %374 = vmatprep.subr.bf16.mxu0 %v153
    %375 = vmatpush1.bf16.msra.mxu0 %v152
    %376 = vmatprep.subr.bf16.mxu0 0
    %377 = vmatpush2.bf16.msra.mxu0 0
    %378 = vmatprep.subr.bf16.mxu0 0
    %379 = vmatpush2.bf16.msra.mxu0 0
    %380 = vmatprep.subr.bf16.mxu0 0
    %381 = vmatpush2.bf16.msra.mxu0 0
    %382 = vmatprep.subr.bf16.mxu0 0
    %383 = vmatpush2.bf16.msra.mxu0 0
    %384 = vmatprep.subr.bf16.mxu0 0
    %385 = vmatpush2.bf16.msra.mxu0 0
    %386 = vmatprep.subr.bf16.mxu0 0
    %387 = vmatpush2.bf16.msra.mxu0 0
    %388 = vmatprep.subr.bf16.mxu0 0
    %389 = vmatpush2.bf16.msra.mxu0 0
    %390 = vmatprep.subr.bf16.mxu0 0
    %391 = vmatpush2.bf16.msra.mxu0 0
    %392 = vmatprep.mubr.bf16.mxu0 0
    %393 = vmatmul.mubr.bf16.gmra.mxu0 %v196
    %v394 = vpop.f32.mrf.mxu0
    %v395 = vadd.f32 0.0, %v394
    %v396 = vpop.f32.mrf.mxu0
    %v397 = vadd.f32 0.0, %v396
    %v398 = vpop.f32.mrf.mxu0
    %v399 = vadd.f32 0.0, %v398
    %v400 = vpop.f32.mrf.mxu0
    %v401 = vadd.f32 0.0, %v400
    %402 = vmatprep.mubr.bf16.mxu0 0
    %403 = vmatmul.mubr.bf16.gmra.mxu0 %v199
    %v404 = vpop.f32.mrf.mxu0
    %v405 = vadd.f32 0.0, %v404
    %v406 = vpop.f32.mrf.mxu0
    %v407 = vadd.f32 0.0, %v406
    %v408 = vpop.f32.mrf.mxu0
    %v409 = vadd.f32 0.0, %v408
    %v410 = vpop.f32.mrf.mxu0
    %v411 = vadd.f32 0.0, %v410
    %412 = vdwg.mxu0
    %413 = vmatprep.subr.bf16.mxu0 0
    %414 = vmatpush1.bf16.msra.mxu0 0
    %415 = vmatprep.subr.bf16.mxu0 0
    %416 = vmatpush1.bf16.msra.mxu0 0
    %417 = vmatprep.subr.bf16.mxu0 0
    %418 = vmatpush1.bf16.msra.mxu0 0
    %419 = vmatprep.subr.bf16.mxu0 0
    %420 = vmatpush1.bf16.msra.mxu0 0
    %421 = vmatprep.subr.bf16.mxu0 0
    %422 = vmatpush1.bf16.msra.mxu0 0
    %423 = vmatprep.subr.bf16.mxu0 0
    %424 = vmatpush1.bf16.msra.mxu0 0
    %425 = vmatprep.subr.bf16.mxu0 %v167
    %426 = vmatpush1.bf16.msra.mxu0 %v166
    %427 = vmatprep.subr.bf16.mxu0 %v155
    %428 = vmatpush1.bf16.msra.mxu0 %v154
    %429 = vmatprep.subr.bf16.mxu0 0
    %430 = vmatpush2.bf16.msra.mxu0 0
    %431 = vmatprep.subr.bf16.mxu0 0
    %432 = vmatpush2.bf16.msra.mxu0 0
    %433 = vmatprep.subr.bf16.mxu0 0
    %434 = vmatpush2.bf16.msra.mxu0 0
    %435 = vmatprep.subr.bf16.mxu0 0
    %436 = vmatpush2.bf16.msra.mxu0 0
    %437 = vmatprep.subr.bf16.mxu0 0
    %438 = vmatpush2.bf16.msra.mxu0 0
    %439 = vmatprep.subr.bf16.mxu0 0
    %440 = vmatpush2.bf16.msra.mxu0 0
    %441 = vmatprep.subr.bf16.mxu0 0
    %442 = vmatpush2.bf16.msra.mxu0 0
    %443 = vmatprep.subr.bf16.mxu0 0
    %444 = vmatpush2.bf16.msra.mxu0 0
    %445 = vmatprep.mubr.bf16.mxu0 0
    %446 = vmatmul.mubr.bf16.gmra.mxu0 %v196
    %v447 = vpop.f32.mrf.mxu0
    %v448 = vadd.f32 0.0, %v447
    %v449 = vpop.f32.mrf.mxu0
    %v450 = vadd.f32 0.0, %v449
    %v451 = vpop.f32.mrf.mxu0
    %v452 = vadd.f32 0.0, %v451
    %v453 = vpop.f32.mrf.mxu0
    %v454 = vadd.f32 0.0, %v453
    %455 = vmatprep.mubr.bf16.mxu0 0
    %456 = vmatmul.mubr.bf16.gmra.mxu0 %v199
    %v457 = vpop.f32.mrf.mxu0
    %v458 = vadd.f32 0.0, %v457
    %v459 = vpop.f32.mrf.mxu0
    %v460 = vadd.f32 0.0, %v459
    %v461 = vpop.f32.mrf.mxu0
    %v462 = vadd.f32 0.0, %v461
    %v463 = vpop.f32.mrf.mxu0
    %v464 = vadd.f32 0.0, %v463
    %465 = vdwg.mxu0
    %466 = vmatprep.subr.bf16.mxu0 0
    %467 = vmatpush1.bf16.msra.mxu0 0
    %468 = vmatprep.subr.bf16.mxu0 0
    %469 = vmatpush1.bf16.msra.mxu0 0
    %470 = vmatprep.subr.bf16.mxu0 0
    %471 = vmatpush1.bf16.msra.mxu0 0
    %472 = vmatprep.subr.bf16.mxu0 0
    %473 = vmatpush1.bf16.msra.mxu0 0
    %474 = vmatprep.subr.bf16.mxu0 0
    %475 = vmatpush1.bf16.msra.mxu0 0
    %476 = vmatprep.subr.bf16.mxu0 0
    %477 = vmatpush1.bf16.msra.mxu0 0
    %478 = vmatprep.subr.bf16.mxu0 %v169
    %479 = vmatpush1.bf16.msra.mxu0 %v168
    %480 = vmatprep.subr.bf16.mxu0 %v157
    %481 = vmatpush1.bf16.msra.mxu0 %v156
    %482 = vmatprep.subr.bf16.mxu0 0
    %483 = vmatpush2.bf16.msra.mxu0 0
    %484 = vmatprep.subr.bf16.mxu0 0
    %485 = vmatpush2.bf16.msra.mxu0 0
    %486 = vmatprep.subr.bf16.mxu0 0
    %487 = vmatpush2.bf16.msra.mxu0 0
    %488 = vmatprep.subr.bf16.mxu0 0
    %489 = vmatpush2.bf16.msra.mxu0 0
    %490 = vmatprep.subr.bf16.mxu0 0
    %491 = vmatpush2.bf16.msra.mxu0 0
    %492 = vmatprep.subr.bf16.mxu0 0
    %493 = vmatpush2.bf16.msra.mxu0 0
    %494 = vmatprep.subr.bf16.mxu0 0
    %495 = vmatpush2.bf16.msra.mxu0 0
    %496 = vmatprep.subr.bf16.mxu0 0
    %497 = vmatpush2.bf16.msra.mxu0 0
    %498 = vmatprep.mubr.bf16.mxu0 0
    %499 = vmatmul.mubr.bf16.gmra.mxu0 %v196
    %v500 = vpop.f32.mrf.mxu0
    %v501 = vadd.f32 0.0, %v500
    %v502 = vpop.f32.mrf.mxu0
    %v503 = vadd.f32 0.0, %v502
    %v504 = vpop.f32.mrf.mxu0
    %v505 = vadd.f32 0.0, %v504
    %v506 = vpop.f32.mrf.mxu0
    %v507 = vadd.f32 0.0, %v506
    %508 = vmatprep.mubr.bf16.mxu0 0
    %509 = vmatmul.mubr.bf16.gmra.mxu0 %v199
    %v510 = vpop.f32.mrf.mxu0
    %v511 = vadd.f32 0.0, %v510
    %v512 = vpop.f32.mrf.mxu0
    %v513 = vadd.f32 0.0, %v512
    %v514 = vpop.f32.mrf.mxu0
    %v515 = vadd.f32 0.0, %v514
    %v516 = vpop.f32.mrf.mxu0
    %v517 = vadd.f32 0.0, %v516
    %518 = vdwg.mxu0
    %vm523 = vcmask 1046528
    %v524 = vrot.slane %v238, 1
    %v525 = vrot.slane %v242, 1
    %v526 = vsel %vm523, %v524, %v525
    %v527 = vrot.slane %v248, 1
    %v528 = vrot.slane %v252, 1
    %v529 = vsel %vm523, %v527, %v528
    %v534 = vadd.f32 %v236, %v526
    %v535 = vadd.f32 %v240, %v525
    %v536 = vadd.f32 %v246, %v529
    %v537 = vadd.f32 %v250, %v528
    %vm542 = vcmask 1045504
    %v543 = vrot.slane %v289, 2
    %v544 = vrot.slane %v293, 2
    %v545 = vsel %vm542, %v543, %v544
    %v546 = vrot.slane %v299, 2
    %v547 = vrot.slane %v303, 2
    %v548 = vsel %vm542, %v546, %v547
    %v553 = vadd.f32 %v534, %v545
    %v554 = vadd.f32 %v535, %v544
    %v555 = vadd.f32 %v536, %v548
    %v556 = vadd.f32 %v537, %v547
    %v557 = vsel %vm542, %v554, -inf
    %v558 = vmax.f32 %v553, %v557
    %v559 = vrot.slane %v558, 4
    %v560 = vmax.f32 %v558, %v559
    %v561 = vrot.slane %v560, 2
    %v562 = vmax.f32 %v560, %v561
    %v563 = vrot.slane %v562, 1
    %v564 = vmax.f32 %v562, %v563
    %v565 = vsel %vm542, %v556, -inf
    %v566 = vmax.f32 %v555, %v565
    %v567 = vrot.slane %v566, 4
    %v568 = vmax.f32 %v566, %v567
    %v569 = vrot.slane %v568, 2
    %v570 = vmax.f32 %v568, %v569
    %v571 = vrot.slane %v570, 1
    %v572 = vmax.f32 %v570, %v571
    %v577 = vrot.slane %v342, 1
    %v578 = vrot.slane %v346, 1
    %v579 = vsel %vm523, %v577, %v578
    %v580 = vrot.slane %v352, 1
    %v581 = vrot.slane %v356, 1
    %v582 = vsel %vm523, %v580, %v581
    %v587 = vadd.f32 %v291, %v579
    %v588 = vadd.f32 %v295, %v578
    %v589 = vadd.f32 %v301, %v582
    %v590 = vadd.f32 %v305, %v581
    %v595 = vrot.slane %v344, 2
    %v596 = vrot.slane %v348, 2
    %v597 = vsel %vm542, %v595, %v596
    %v598 = vrot.slane %v354, 2
    %v599 = vrot.slane %v358, 2
    %v600 = vsel %vm542, %v598, %v599
    %v605 = vadd.f32 %v587, %v597
    %v606 = vadd.f32 %v588, %v596
    %v607 = vadd.f32 %v589, %v600
    %v608 = vadd.f32 %v590, %v599
    %vm613 = vcmask 1044480
    %v614 = vrot.slane %v395, 3
    %v615 = vrot.slane %v399, 3
    %v616 = vsel %vm613, %v614, %v615
    %v617 = vrot.slane %v405, 3
    %v618 = vrot.slane %v409, 3
    %v619 = vsel %vm613, %v617, %v618
    %v624 = vadd.f32 %v605, %v616
    %v625 = vadd.f32 %v606, %v615
    %v626 = vadd.f32 %v607, %v619
    %v627 = vadd.f32 %v608, %v618
    %v628 = vsel %vm613, %v625, -inf
    %v629 = vmax.f32 %v624, %v628
    %v630 = vrot.slane %v629, 4
    %v631 = vmax.f32 %v629, %v630
    %v632 = vrot.slane %v631, 2
    %v633 = vmax.f32 %v631, %v632
    %v634 = vrot.slane %v633, 1
    %v635 = vmax.f32 %v633, %v634
    %v636 = vsel %vm613, %v627, -inf
    %v637 = vmax.f32 %v626, %v636
    %v638 = vrot.slane %v637, 4
    %v639 = vmax.f32 %v637, %v638
    %v640 = vrot.slane %v639, 2
    %v641 = vmax.f32 %v639, %v640
    %v642 = vrot.slane %v641, 1
    %v643 = vmax.f32 %v641, %v642
    %v648 = vrot.slane %v448, 1
    %v649 = vrot.slane %v452, 1
    %v650 = vsel %vm523, %v648, %v649
    %v651 = vrot.slane %v458, 1
    %v652 = vrot.slane %v462, 1
    %v653 = vsel %vm523, %v651, %v652
    %v658 = vadd.f32 %v397, %v650
    %v659 = vadd.f32 %v401, %v649
    %v660 = vadd.f32 %v407, %v653
    %v661 = vadd.f32 %v411, %v652
    %v666 = vrot.slane %v450, 2
    %v667 = vrot.slane %v454, 2
    %v668 = vsel %vm542, %v666, %v667
    %v669 = vrot.slane %v460, 2
    %v670 = vrot.slane %v464, 2
    %v671 = vsel %vm542, %v669, %v670
    %v676 = vadd.f32 %v658, %v668
    %v677 = vadd.f32 %v659, %v667
    %v678 = vadd.f32 %v660, %v671
    %v679 = vadd.f32 %v661, %v670
    %v684 = vrot.slane %v501, 3
    %v685 = vrot.slane %v505, 3
    %v686 = vsel %vm613, %v684, %v685
    %v687 = vrot.slane %v511, 3
    %v688 = vrot.slane %v515, 3
    %v689 = vsel %vm613, %v687, %v688
    %v694 = vadd.f32 %v676, %v686
    %v695 = vadd.f32 %v677, %v685
    %v696 = vadd.f32 %v678, %v689
    %v697 = vadd.f32 %v679, %v688
    %vm702 = vcmask 1043456
    %v703 = vrot.slane %v503, 4
    %v704 = vrot.slane %v507, 4
    %v705 = vsel %vm702, %v703, %v704
    %v706 = vrot.slane %v513, 4
    %v707 = vrot.slane %v517, 4
    %v708 = vsel %vm702, %v706, %v707
    %v713 = vadd.f32 %v694, %v705
    %v714 = vadd.f32 %v695, %v704
    %v715 = vadd.f32 %v696, %v708
    %v716 = vadd.f32 %v697, %v707
    %v717 = vsel %vm702, %v714, -inf
    %v718 = vmax.f32 %v713, %v717
    %v719 = vrot.slane %v718, 4
    %v720 = vmax.f32 %v718, %v719
    %v721 = vrot.slane %v720, 2
    %v722 = vmax.f32 %v720, %v721
    %v723 = vrot.slane %v722, 1
    %v724 = vmax.f32 %v722, %v723
    %v725 = vsel %vm702, %v716, -inf
    %v726 = vmax.f32 %v715, %v725
    %v727 = vrot.slane %v726, 4
    %v728 = vmax.f32 %v726, %v727
    %v729 = vrot.slane %v728, 2
    %v730 = vmax.f32 %v728, %v729
    %v731 = vrot.slane %v730, 1
    %v732 = vmax.f32 %v730, %v731
    %vm735 = vcmask 1041409
    %v736 = vsel %vm735, %v572, %v564
    %v740 = vsel %vm735, %v643, %v635
    %v744 = vsel %vm735, %v732, %v724
    %v746 = vld [vmem:[%s2] sm:$0x7]
    %v748 = vlaneseq
    %v749 = vshrl.u32 %v748, 7
    %v750 = vsub.s32 0, %v749
    %v751 = vrot.slane %v746, %v750
    %v752 = vlaneseq
    %v753 = vshrl.u32 %v752, 7
    %v754 = vsub.s32 1, %v753
    %v755 = vrot.slane %v746, %v754
    %v756 = vlaneseq
    %v757 = vshrl.u32 %v756, 7
    %v758 = vsub.s32 2, %v757
    %v759 = vrot.slane %v746, %v758
    %v763 = vadd.f32 %v736, %v751
    %v764 = vadd.f32 %v740, %v755
    %v765 = vadd.f32 %v744, %v759
    %v766 = vmax.f32 %v763, 0.0
    %v767 = vmax.f32 %v764, 0.0
    %v768 = vmax.f32 %v765, 0.0
    %v769 = vpack.c.bf16 %v766, %v766
    %v770 = vpack.c.bf16 %v767, %v767
    %v771 = vpack.c.bf16 %v768, %v768
    %v772 = vld [vmem:[#allocation2] sm:$0xf]
    %v773 = vld [vmem:[#allocation2 + $0x4] sm:$0xf]
    %v774 = vld [vmem:[#allocation2 + $0x8] sm:$0xf]
    %v775 = vld [vmem:[#allocation2 + $0xc] sm:$0xf]
    %v776 = vld [vmem:[#allocation2 + $0x10] sm:$0xf]
    %v777 = vld [vmem:[#allocation2 + $0x14] sm:$0xf]
    %v778 = vld [vmem:[#allocation2 + $0x18] sm:$0xf]
    %v779 = vld [vmem:[#allocation2 + $0x1c] sm:$0xf]
    %v780 = vld [vmem:[#allocation2 + $0x20] sm:$0xf]
    %v781 = vld [vmem:[#allocation2 + $0x24] sm:$0xf]
    %v782 = vld [vmem:[#allocation2 + $0x28] sm:$0xf]
    %v783 = vld [vmem:[#allocation2 + $0x2c] sm:$0xf]
    %v784 = vld [vmem:[#allocation2 + $0x30] sm:$0xf]
    %v785 = vld [vmem:[#allocation2 + $0x34] sm:$0xf]
    %v786 = vld [vmem:[#allocation2 + $0x38] sm:$0xf]
    %v787 = vld [vmem:[#allocation2 + $0x3c] sm:$0xf]
    %v788 = vld [vmem:[#allocation2 + $0x40] sm:$0xf]
    %v789 = vld [vmem:[#allocation2 + $0x44] sm:$0xf]
    %v790 = vld [vmem:[#allocation2 + $0x48] sm:$0xf]
    %v791 = vld [vmem:[#allocation2 + $0x4c] sm:$0xf]
    %v792 = vld [vmem:[#allocation2 + $0x50] sm:$0xf]
    %v793 = vld [vmem:[#allocation2 + $0x54] sm:$0xf]
    %v794 = vld [vmem:[#allocation2 + $0x58] sm:$0xf]
    %v795 = vld [vmem:[#allocation2 + $0x5c] sm:$0xf]
    %v796 = vld [vmem:[#allocation2 + $0x60] sm:$0xf]
    %v797 = vld [vmem:[#allocation2 + $0x64] sm:$0xf]
    %v798 = vld [vmem:[#allocation2 + $0x68] sm:$0xf]
    %v799 = vld [vmem:[#allocation2 + $0x6c] sm:$0xf]
    %v800 = vld [vmem:[#allocation2 + $0x70] sm:$0xf]
    %v801 = vld [vmem:[#allocation2 + $0x74] sm:$0xf]
    %v802 = vld [vmem:[#allocation2 + $0x78] sm:$0xf]
    %v803 = vld [vmem:[#allocation2 + $0x7c] sm:$0xf]
    %v804 = vld [vmem:[#allocation2 + $0x80] sm:$0xf]
    %v805 = vld [vmem:[#allocation2 + $0x84] sm:$0xf]
    %v806 = vld [vmem:[#allocation2 + $0x88] sm:$0xf]
    %v807 = vld [vmem:[#allocation2 + $0x8c] sm:$0xf]
    %v808 = vld [vmem:[#allocation2 + $0x90] sm:$0xf]
    %v809 = vld [vmem:[#allocation2 + $0x94] sm:$0xf]
    %v810 = vld [vmem:[#allocation2 + $0x98] sm:$0xf]
    %v811 = vld [vmem:[#allocation2 + $0x9c] sm:$0xf]
    %v812 = vld [vmem:[#allocation2 + $0xa0] sm:$0xf]
    %v813 = vld [vmem:[#allocation2 + $0xa4] sm:$0xf]
    %v814 = vld [vmem:[#allocation2 + $0xa8] sm:$0xf]
    %v815 = vld [vmem:[#allocation2 + $0xac] sm:$0xf]
    %v816 = vld [vmem:[#allocation2 + $0xb0] sm:$0xf]
    %v817 = vld [vmem:[#allocation2 + $0xb4] sm:$0xf]
    %v818 = vld [vmem:[#allocation2 + $0xb8] sm:$0xf]
    %v819 = vld [vmem:[#allocation2 + $0xbc] sm:$0xf]
    %v820 = vld [vmem:[%s4] sm:$0x1]
    %v822 = vlaneseq
    %v823 = vshrl.u32 %v822, 7
    %v824 = vsub.s32 0, %v823
    %v825 = vrot.slane %v820, %v824
    %v875 = vunpack.c.l.b16 %v772
    %v876 = vunpack.c.l.b16 %v773
    %v877 = vunpack.c.l.b16 %v774
    %v878 = vunpack.c.l.b16 %v775
    %v879 = vunpack.c.l.b16 %v776
    %v880 = vunpack.c.l.b16 %v777
    %v881 = vunpack.c.l.b16 %v778
    %v882 = vunpack.c.l.b16 %v779
    %v883 = vunpack.c.l.b16 %v780
    %v884 = vunpack.c.l.b16 %v781
    %v885 = vunpack.c.l.b16 %v782
    %v886 = vunpack.c.l.b16 %v783
    %v887 = vunpack.c.l.b16 %v784
    %v888 = vunpack.c.l.b16 %v785
    %v889 = vunpack.c.l.b16 %v786
    %v890 = vunpack.c.l.b16 %v787
    %v891 = vunpack.c.l.b16 %v788
    %v892 = vunpack.c.l.b16 %v789
    %v893 = vunpack.c.l.b16 %v790
    %v894 = vunpack.c.l.b16 %v791
    %v895 = vunpack.c.l.b16 %v792
    %v896 = vunpack.c.l.b16 %v793
    %v897 = vunpack.c.l.b16 %v794
    %v898 = vunpack.c.l.b16 %v795
    %v899 = vunpack.c.l.b16 %v796
    %v900 = vunpack.c.l.b16 %v797
    %v901 = vunpack.c.l.b16 %v798
    %v902 = vunpack.c.l.b16 %v799
    %v903 = vunpack.c.l.b16 %v800
    %v904 = vunpack.c.l.b16 %v801
    %v905 = vunpack.c.l.b16 %v802
    %v906 = vunpack.c.l.b16 %v803
    %v907 = vunpack.c.l.b16 %v804
    %v908 = vunpack.c.l.b16 %v805
    %v909 = vunpack.c.l.b16 %v806
    %v910 = vunpack.c.l.b16 %v807
    %v911 = vunpack.c.l.b16 %v808
    %v912 = vunpack.c.l.b16 %v809
    %v913 = vunpack.c.l.b16 %v810
    %v914 = vunpack.c.l.b16 %v811
    %v915 = vunpack.c.l.b16 %v812
    %v916 = vunpack.c.l.b16 %v813
    %v917 = vunpack.c.l.b16 %v814
    %v918 = vunpack.c.l.b16 %v815
    %v919 = vunpack.c.l.b16 %v816
    %v920 = vunpack.c.l.b16 %v817
    %v921 = vunpack.c.l.b16 %v818
    %v922 = vunpack.c.l.b16 %v819
    %v923 = vpack.c.b16 %v876, %v875
    %v924 = vpack.c.b16 %v878, %v877
    %v925 = vpack.c.b16 %v880, %v879
    %v926 = vpack.c.b16 %v882, %v881
    %v927 = vpack.c.b16 %v884, %v883
    %v928 = vpack.c.b16 %v886, %v885
    %v929 = vpack.c.b16 %v888, %v887
    %v930 = vpack.c.b16 %v890, %v889
    %v931 = vpack.c.b16 %v892, %v891
    %v932 = vpack.c.b16 %v894, %v893
    %v933 = vpack.c.b16 %v896, %v895
    %v934 = vpack.c.b16 %v898, %v897
    %v935 = vpack.c.b16 %v900, %v899
    %v936 = vpack.c.b16 %v902, %v901
    %v937 = vpack.c.b16 %v904, %v903
    %v938 = vpack.c.b16 %v906, %v905
    %v939 = vpack.c.b16 %v908, %v907
    %v940 = vpack.c.b16 %v910, %v909
    %v941 = vpack.c.b16 %v912, %v911
    %v942 = vpack.c.b16 %v914, %v913
    %v943 = vpack.c.b16 %v916, %v915
    %v944 = vpack.c.b16 %v918, %v917
    %v945 = vpack.c.b16 %v920, %v919
    %v946 = vpack.c.b16 %v922, %v921
    %971 = vmatprep.subr.bf16.mxu0 0
    %972 = vmatpush1.bf16.msra.mxu0 %v930
    %973 = vmatprep.subr.bf16.mxu0 0
    %974 = vmatpush1.bf16.msra.mxu0 %v929
    %975 = vmatprep.subr.bf16.mxu0 0
    %976 = vmatpush1.bf16.msra.mxu0 %v928
    %977 = vmatprep.subr.bf16.mxu0 0
    %978 = vmatpush1.bf16.msra.mxu0 %v927
    %979 = vmatprep.subr.bf16.mxu0 0
    %980 = vmatpush1.bf16.msra.mxu0 %v926
    %981 = vmatprep.subr.bf16.mxu0 0
    %982 = vmatpush1.bf16.msra.mxu0 %v925
    %983 = vmatprep.subr.bf16.mxu0 0
    %984 = vmatpush1.bf16.msra.mxu0 %v924
    %985 = vmatprep.subr.bf16.mxu0 0
    %986 = vmatpush1.bf16.msra.mxu0 %v923
    %987 = vmatprep.subr.bf16.mxu0 0
    %988 = vmatpush2.bf16.msra.mxu0 %v938
    %989 = vmatprep.subr.bf16.mxu0 0
    %990 = vmatpush2.bf16.msra.mxu0 %v937
    %991 = vmatprep.subr.bf16.mxu0 0
    %992 = vmatpush2.bf16.msra.mxu0 %v936
    %993 = vmatprep.subr.bf16.mxu0 0
    %994 = vmatpush2.bf16.msra.mxu0 %v935
    %995 = vmatprep.subr.bf16.mxu0 0
    %996 = vmatpush2.bf16.msra.mxu0 %v934
    %997 = vmatprep.subr.bf16.mxu0 0
    %998 = vmatpush2.bf16.msra.mxu0 %v933
    %999 = vmatprep.subr.bf16.mxu0 0
    %1000 = vmatpush2.bf16.msra.mxu0 %v932
    %1001 = vmatprep.subr.bf16.mxu0 0
    %1002 = vmatpush2.bf16.msra.mxu0 %v931
    %1003 = vmatprep.mubr.bf16.mxu0 %v770
    %1004 = vmatmul.mubr.bf16.gmra.mxu0 %v769
    %v1005 = vpop.f32.mrf.mxu0
    %v1006 = vadd.f32 %v825, %v1005
    %v1007 = vpop.f32.mrf.mxu0
    %v1008 = vpop.f32.mrf.mxu0
    %v1009 = vpop.f32.mrf.mxu0
    %1010 = vdwg.mxu0
    %1011 = vmatprep.subr.bf16.mxu0 0
    %1012 = vmatpush1.bf16.msra.mxu0 %v946
    %1013 = vmatprep.subr.bf16.mxu0 0
    %1014 = vmatpush1.bf16.msra.mxu0 %v945
    %1015 = vmatprep.subr.bf16.mxu0 0
    %1016 = vmatpush1.bf16.msra.mxu0 %v944
    %1017 = vmatprep.subr.bf16.mxu0 0
    %1018 = vmatpush1.bf16.msra.mxu0 %v943
    %1019 = vmatprep.subr.bf16.mxu0 0
    %1020 = vmatpush1.bf16.msra.mxu0 %v942
    %1021 = vmatprep.subr.bf16.mxu0 0
    %1022 = vmatpush1.bf16.msra.mxu0 %v941
    %1023 = vmatprep.subr.bf16.mxu0 0
    %1024 = vmatpush1.bf16.msra.mxu0 %v940
    %1025 = vmatprep.subr.bf16.mxu0 0
    %1026 = vmatpush1.bf16.msra.mxu0 %v939
    %1027 = vmatprep.subr.bf16.mxu0 0
    %1028 = vmatpush2.bf16.msra.mxu0 0
    %1029 = vmatprep.subr.bf16.mxu0 0
    %1030 = vmatpush2.bf16.msra.mxu0 0
    %1031 = vmatprep.subr.bf16.mxu0 0
    %1032 = vmatpush2.bf16.msra.mxu0 0
    %1033 = vmatprep.subr.bf16.mxu0 0
    %1034 = vmatpush2.bf16.msra.mxu0 0
    %1035 = vmatprep.subr.bf16.mxu0 0
    %1036 = vmatpush2.bf16.msra.mxu0 0
    %1037 = vmatprep.subr.bf16.mxu0 0
    %1038 = vmatpush2.bf16.msra.mxu0 0
    %1039 = vmatprep.subr.bf16.mxu0 0
    %1040 = vmatpush2.bf16.msra.mxu0 0
    %1041 = vmatprep.subr.bf16.mxu0 0
    %1042 = vmatpush2.bf16.msra.mxu0 0
    %1043 = vmatprep.mubr.bf16.mxu0 0
    %1044 = vmatmul.mubr.bf16.gmra.mxu0 %v771
    %v1045 = vpop.f32.mrf.mxu0
    %v1046 = vadd.f32 %v1006, %v1045
    %v1047 = vpop.f32.mrf.mxu0
    %v1048 = vpop.f32.mrf.mxu0
    %v1049 = vpop.f32.mrf.mxu0
    %1050 = vdwg.mxu0
    %1051 = vst [vmem:[#allocation5] sm:$0x3] %v1046
    // Predicated region
    $region26: #{textcnn_forward.1} parent=1 // pred_check
      _
    $region27: #{textcnn_forward.1} parent=1 // pred_check_branch
      %1053 = sbr.rel (0) target = $region29
    $region28: #{textcnn_forward.1} parent=1 // pred_region
      %s1055 = ssub.s32 32, 32
      %1056 = vsyncadd [#allocation4], %s1055
      %s1058 = sshll.u32 [#allocation5], 4
      %s1059 = int_to_ptr.vmem [resolvable:$true] %s1058
      %1061 = dma.vmem_to_hbm [thread:$0]  %s1059, 32, %s5, [#allocation4]
    $region29: #{textcnn_forward.1} parent=1 // pred_fallthru
      _
    // Predicated region
    $region30: #{textcnn_forward.1} parent=1 // pred_check
      _
    $region31: #{textcnn_forward.1} parent=1 // pred_check_branch
      %1063 = sbr.rel (0) target = $region33
    $region32: #{textcnn_forward.1} parent=1 // pred_region
      %1064 = dma.done [#allocation4], 32
    $region33: #{textcnn_forward.1} parent=1 // pred_fallthru
      _
    %1065 = vsyncpa [#allocation3], 1
    %1066 = vsyncpa [#allocation4], 1

</llo_original>
